<compile_context>
chip_gen: v5e
topology: v5e:2x2
jax: 0.10.0
libtpu: 0.0.40
codegen_flags: <defaults>
</compile_context>

<pallas_src>
import jax
import jax.numpy as jnp
import numpy as np
from jax.experimental import pallas as pl
from jax.experimental.pallas import tpu as pltpu

BN_EPS = 1e-5  # PyTorch BatchNorm2d default eps


def _basic_block_kernel(x_ref, wb1_ref, g1_ref, b1_ref, wb2_ref, g2_ref,
                        b2_ref, fold_ref, spread_ref, out_ref, col_ref):
  """Fused BasicBlock forward (single grid step).

  x_ref      : (N, H, W*C)   f32  input, NHWC flattened to lane-dense rows
  wb1_ref    : (3*W*C, W*C)  bf16 banded+concatenated conv1 weights
  g1_ref     : (1, C)        f32  bn1 gamma
  b1_ref     : (1, C)        f32  bn1 beta
  wb2_ref    : (3*W*C, W*C)  bf16 banded+concatenated conv2 weights
  g2_ref     : (1, C)        f32  bn2 gamma
  b2_ref     : (1, C)        f32  bn2 beta
  fold_ref   : (W*C, C)      f32  0/1 matrix summing the W lane-copies / chan
  spread_ref : (C, W*C)      f32  0/1 matrix broadcasting chan -> W copies
  out_ref    : (N*H, W*C)    f32  lane-dense output slab
  col_ref    : VMEM (N, H, 3*W*C) f32 im2col scratch (3 vertical shifts)
  """
  N, H, WC = x_ref.shape
  C = g1_ref.shape[1]
  W = WC // C
  M = N * H
  K = 3 * WC
  inv_cnt = 1.0 / float(N * H * W)

  # Zero the two vertical-padding rows once; both convs reuse them (interior
  # rows of the im2col scratch are always fully overwritten, lane-aligned).
  col_ref[:, 0:1, 0:WC] = jnp.zeros((N, 1, WC), jnp.float32)
  col_ref[:, H - 1:H, 2 * WC:3 * WC] = jnp.zeros((N, 1, WC), jnp.float32)

  def fill_im2col(act):
    # act: (N, H, W*C) f32.  ky-block k holds input row h + k - 1.
    col_ref[:, :, WC:2 * WC] = act                          # ky = 1 (center)
    col_ref[:, 1:H, 0:WC] = act[:, 0:H - 1, :]              # ky = 0 (row h-1)
    col_ref[:, 0:H - 1, 2 * WC:3 * WC] = act[:, 1:H, :]     # ky = 2 (row h+1)

  def conv3x3(wb_ref):
    # Single lane-dense MXU matmul: (M, 3*W*C) bf16 @ (3*W*C, W*C) bf16.
    slab = col_ref[...].reshape(M, K).astype(jnp.bfloat16)
    return jnp.dot(slab, wb_ref[...], preferred_element_type=jnp.float32)

  def bn_fold(acc, g_ref, b_ref):
    # One-pass batch statistics per channel (over N*H*W), folded into a
    # single scale/bias FMA applied in the lane-dense layout.  All f32.
    s1 = jnp.sum(acc, axis=0, keepdims=True)                 # (1, W*C)
    s2 = jnp.sum(acc * acc, axis=0, keepdims=True)           # (1, W*C)
    s = jnp.concatenate([s1, s2], axis=0)                    # (2, W*C)
    cs = jnp.dot(s, fold_ref[...],
                 preferred_element_type=jnp.float32)         # (2, C)
    mean = cs[0:1, :] * inv_cnt                              # (1, C)
    var = cs[1:2, :] * inv_cnt - mean * mean                 # biased var
    scale = g_ref[...] * jax.lax.rsqrt(var + BN_EPS)         # (1, C)
    bias = b_ref[...] - mean * scale                         # (1, C)
    sb = jnp.concatenate([scale, bias], axis=0)              # (2, C)
    sbt = jnp.dot(sb, spread_ref[...],
                  preferred_element_type=jnp.float32)        # (2, W*C)
    return acc * sbt[0:1, :] + sbt[1:2, :]

  x = x_ref[...]

  # ---- conv1 -> bn1 -> relu ----------------------------------------------
  fill_im2col(x)
  h1 = jnp.maximum(bn_fold(conv3x3(wb1_ref), g1_ref, b1_ref), 0.0)

  # ---- conv2 -> bn2 (reuse im2col scratch; zero padding rows still valid) -
  fill_im2col(h1.reshape(N, H, WC))
  h2 = bn_fold(conv3x3(wb2_ref), g2_ref, b2_ref)

  # ---- residual add + relu, unmasked lane-dense store ----------------------
  # TODO(synk): downsample is None in this instantiation; a non-None
  # downsample (1x1 conv + BN on the residual path) is not implemented.
  out_ref[...] = jnp.maximum(h2 + x.reshape(M, WC), 0.0)


def _banded_conv_weights(w_oihw, W):
  """PyTorch (Cout, Cin, 3, 3) weights -> (3*W*Cin, W*Cout) bf16 matrix.

  Row index (ky*W + p)*Cin + a, column index x*Cout + b, value
  w[b, a, ky, p - x + 1] when 0 <= p - x + 1 <= 2, else 0.  Zero padding
  (p = -1 / p = W) is implicit: those taps simply have no row, so a single
  (M, 3*W*Cin) im2col slab @ this matrix performs the full 3x3 conv.
  """
  w = np.asarray(w_oihw, np.float32)
  c_out, c_in, kh, kw = w.shape
  w_hwio = np.transpose(w, (2, 3, 1, 0))                     # (kh, kw, ci, co)
  banded = np.zeros((kh, W, c_in, W, c_out), np.float32)
  for p in range(W):
    for x in range(W):
      kx = p - x + 1
      if 0 <= kx < kw:
        banded[:, p, :, x, :] = w_hwio[:, kx, :, :]
  return jnp.asarray(banded.reshape(kh * W * c_in, W * c_out), jnp.bfloat16)


def prepare_basic_block_params(w1, g1, b1, w2, g2, b2, W):
  """Host-side, call once: prepacked (bf16) weights + BN/fold/spread mats."""
  C = int(np.asarray(w1).shape[0])
  wb1 = _banded_conv_weights(w1, W)
  wb2 = _banded_conv_weights(w2, W)
  eye_c = np.eye(C, dtype=np.float32)
  fold = jnp.asarray(np.tile(eye_c, (W, 1)))                 # (W*C, C)
  spread = jnp.asarray(np.tile(eye_c, (1, W)))               # (C, W*C)
  g1 = jnp.reshape(jnp.asarray(g1, jnp.float32), (1, C))
  b1 = jnp.reshape(jnp.asarray(b1, jnp.float32), (1, C))
  g2 = jnp.reshape(jnp.asarray(g2, jnp.float32), (1, C))
  b2 = jnp.reshape(jnp.asarray(b2, jnp.float32), (1, C))
  return wb1, g1, b1, wb2, g2, b2, fold, spread


@jax.jit
def basic_block_pallas(x_nchw, wb1, g1, b1, wb2, g2, b2, fold, spread):
  """x_nchw: (N, C, H, W) f32; other args from prepare_basic_block_params."""
  N, C, H, W = x_nchw.shape
  WC = W * C
  K = 3 * WC
  M = N * H

  # Wrapper-side layout plumbing only: NCHW -> lane-dense (N, H, W*C) slab.
  x2d = jnp.transpose(x_nchw, (0, 2, 3, 1)).reshape(N, H, WC)

  def full(shape):
    return pl.BlockSpec(shape, lambda i: (0,) * len(shape))

  out2d = pl.pallas_call(
      _basic_block_kernel,
      out_shape=jax.ShapeDtypeStruct((M, WC), jnp.float32),
      grid=(1,),
      in_specs=[
          full((N, H, WC)),        # x
          full((K, WC)),           # banded conv1 weights (bf16)
          full((1, C)),            # gamma1
          full((1, C)),            # beta1
          full((K, WC)),           # banded conv2 weights (bf16)
          full((1, C)),            # gamma2
          full((1, C)),            # beta2
          full((WC, C)),           # fold
          full((C, WC)),           # spread
      ],
      out_specs=full((M, WC)),
      scratch_shapes=[pltpu.VMEM((N, H, K), jnp.float32)],
      compiler_params=pltpu.CompilerParams(
          dimension_semantics=("arbitrary",)),
  )(x2d, wb1, g1, b1, wb2, g2, b2, fold, spread)

  return jnp.transpose(out2d.reshape(N, H, W, C), (0, 3, 1, 2))


def basic_block_ref(x, w1, g1, b1, w2, g2, b2):
  """Pure-JAX NCHW reference (matches PyTorch BasicBlock, training-mode BN)."""
  def conv(x, w):
    return jax.lax.conv_general_dilated(
        x, w, window_strides=(1, 1), padding="SAME",
        dimension_numbers=("NCHW", "OIHW", "NCHW"),
        precision=jax.lax.Precision.HIGHEST)

  def bn(x, g, b):
    mean = jnp.mean(x, axis=(0, 2, 3), keepdims=True)
    var = jnp.mean((x - mean) ** 2, axis=(0, 2, 3), keepdims=True)
    return ((x - mean) * jax.lax.rsqrt(var + BN_EPS)
            * g.reshape(1, -1, 1, 1) + b.reshape(1, -1, 1, 1))

  out = jax.nn.relu(bn(conv(x, w1), g1, b1))
  out = bn(conv(out, w2), g2, b2)
  return jax.nn.relu(out + x)


if __name__ == "__main__":
  # Small shapes: N=2, inplanes=planes=8, H=W=16 (NCHW, as in PyTorch).
  N, C, H, W = 2, 8, 16, 16
  key = jax.random.PRNGKey(0)
  kx, k1, k2, kg1, kb1, kg2, kb2 = jax.random.split(key, 7)

  x = jax.random.normal(kx, (N, C, H, W), jnp.float32)
  w1 = 0.1 * jax.random.normal(k1, (C, C, 3, 3), jnp.float32)   # OIHW
  w2 = 0.1 * jax.random.normal(k2, (C, C, 3, 3), jnp.float32)
  g1 = 1.0 + 0.1 * jax.random.normal(kg1, (C,), jnp.float32)
  b1 = 0.1 * jax.random.normal(kb1, (C,), jnp.float32)
  g2 = 1.0 + 0.1 * jax.random.normal(kg2, (C,), jnp.float32)
  b2 = 0.1 * jax.random.normal(kb2, (C,), jnp.float32)

  # One-time host-side weight prep (hoisted out of the per-call jitted path).
  params = prepare_basic_block_params(w1, g1, b1, w2, g2, b2, W)

  out = jax.block_until_ready(basic_block_pallas(x, *params))
  ref = basic_block_ref(x, w1, g1, b1, w2, g2, b2)
  # Tolerance loosened vs the f32-operand version because the conv MXU
  # operands are bf16 (BN statistics and scale/bias math remain f32).
  np.testing.assert_allclose(np.asarray(out), np.asarray(ref),
                             rtol=3e-2, atol=3e-2)
  print("KERNEL_OK")
</pallas_src>

<mosaic_0001>
module attributes {stable_mosaic.version = 11 : i64} {
  func.func @_basic_block_kernel(%arg0: i32, %arg1: memref<2x16x128xf32, #tpu.memory_space<vmem>>, %arg2: memref<384x128xbf16, #tpu.memory_space<vmem>>, %arg3: memref<1x8xf32, #tpu.memory_space<vmem>>, %arg4: memref<1x8xf32, #tpu.memory_space<vmem>>, %arg5: memref<384x128xbf16, #tpu.memory_space<vmem>>, %arg6: memref<1x8xf32, #tpu.memory_space<vmem>>, %arg7: memref<1x8xf32, #tpu.memory_space<vmem>>, %arg8: memref<128x8xf32, #tpu.memory_space<vmem>>, %arg9: memref<8x128xf32, #tpu.memory_space<vmem>>, %arg10: memref<32x128xf32, #tpu.memory_space<vmem>>, %arg11: memref<2x16x384xf32, #tpu.memory_space<vmem>>) attributes {dimension_semantics = [#tpu.dimension_semantics<arbitrary>], iteration_bounds = array<i64: 1>, scalar_prefetch = 0 : i64, scratch_operands = 1 : i64, tpu.core_type = #tpu.core_type<tc>, window_params = [{pipeline_mode = #tpu.pipeline_mode<synchronous>, transform_indices = @transform_0, window_bounds = array<i64: 2, 16, 128>}, {pipeline_mode = #tpu.pipeline_mode<synchronous>, transform_indices = @transform_1, window_bounds = array<i64: 384, 128>}, {pipeline_mode = #tpu.pipeline_mode<synchronous>, transform_indices = @transform_2, window_bounds = array<i64: 1, 8>}, {pipeline_mode = #tpu.pipeline_mode<synchronous>, transform_indices = @transform_3, window_bounds = array<i64: 1, 8>}, {pipeline_mode = #tpu.pipeline_mode<synchronous>, transform_indices = @transform_4, window_bounds = array<i64: 384, 128>}, {pipeline_mode = #tpu.pipeline_mode<synchronous>, transform_indices = @transform_5, window_bounds = array<i64: 1, 8>}, {pipeline_mode = #tpu.pipeline_mode<synchronous>, transform_indices = @transform_6, window_bounds = array<i64: 1, 8>}, {pipeline_mode = #tpu.pipeline_mode<synchronous>, transform_indices = @transform_7, window_bounds = array<i64: 128, 8>}, {pipeline_mode = #tpu.pipeline_mode<synchronous>, transform_indices = @transform_8, window_bounds = array<i64: 8, 128>}, {pipeline_mode = #tpu.pipeline_mode<synchronous>, transform_indices = @transform_9, window_bounds = array<i64: 32, 128>}]} {
    %cst = arith.constant 0.000000e+00 : f32
    %0 = vector.broadcast %cst : f32 to vector<2x1x128xf32>
    %c0 = arith.constant 0 : index
    %c0_0 = arith.constant 0 : index
    %c0_1 = arith.constant 0 : index
    %1 = vector.load %arg11[%c0, %c0_0, %c0_1] : memref<2x16x384xf32, #tpu.memory_space<vmem>>, vector<2x1x128xf32>
    tpu.vector_store %arg11[%c0, %c0_0, %c0_1], %0 {strides = array<i32>} : memref<2x16x384xf32, #tpu.memory_space<vmem>>, vector<2x1x128xf32>,
    %cst_2 = arith.constant 0.000000e+00 : f32
    %2 = vector.broadcast %cst_2 : f32 to vector<2x1x128xf32>
    %c0_3 = arith.constant 0 : index
    %c15 = arith.constant 15 : index
    %c256 = arith.constant 256 : index
    %3 = vector.load %arg11[%c0_3, %c15, %c256] : memref<2x16x384xf32, #tpu.memory_space<vmem>>, vector<2x1x128xf32>
    tpu.vector_store %arg11[%c0_3, %c15, %c256], %2 {strides = array<i32>} : memref<2x16x384xf32, #tpu.memory_space<vmem>>, vector<2x1x128xf32>,
    %c0_4 = arith.constant 0 : index
    %c0_5 = arith.constant 0 : index
    %c0_6 = arith.constant 0 : index
    %4 = vector.load %arg1[%c0_4, %c0_5, %c0_6] : memref<2x16x128xf32, #tpu.memory_space<vmem>>, vector<2x16x128xf32>
    %c0_7 = arith.constant 0 : index
    %c0_8 = arith.constant 0 : index
    %c128 = arith.constant 128 : index
    %5 = vector.load %arg11[%c0_7, %c0_8, %c128] : memref<2x16x384xf32, #tpu.memory_space<vmem>>, vector<2x16x128xf32>
    tpu.vector_store %arg11[%c0_7, %c0_8, %c128], %4 {strides = array<i32>} : memref<2x16x384xf32, #tpu.memory_space<vmem>>, vector<2x16x128xf32>,
    %6 = vector.extract_strided_slice %4 {offsets = [0, 0, 0], sizes = [2, 15, 128], strides = [1, 1, 1]} : vector<2x16x128xf32> to vector<2x15x128xf32>
    %c0_9 = arith.constant 0 : index
    %c1 = arith.constant 1 : index
    %c0_10 = arith.constant 0 : index
    %7 = vector.load %arg11[%c0_9, %c1, %c0_10] : memref<2x16x384xf32, #tpu.memory_space<vmem>>, vector<2x15x128xf32>
    tpu.vector_store %arg11[%c0_9, %c1, %c0_10], %6 {strides = array<i32>} : memref<2x16x384xf32, #tpu.memory_space<vmem>>, vector<2x15x128xf32>,
    %8 = vector.extract_strided_slice %4 {offsets = [0, 1, 0], sizes = [2, 15, 128], strides = [1, 1, 1]} : vector<2x16x128xf32> to vector<2x15x128xf32>
    %c0_11 = arith.constant 0 : index
    %c0_12 = arith.constant 0 : index
    %c256_13 = arith.constant 256 : index
    %9 = vector.load %arg11[%c0_11, %c0_12, %c256_13] : memref<2x16x384xf32, #tpu.memory_space<vmem>>, vector<2x15x128xf32>
    tpu.vector_store %arg11[%c0_11, %c0_12, %c256_13], %8 {strides = array<i32>} : memref<2x16x384xf32, #tpu.memory_space<vmem>>, vector<2x15x128xf32>,
    %c0_14 = arith.constant 0 : index
    %c0_15 = arith.constant 0 : index
    %c0_16 = arith.constant 0 : index
    %10 = vector.load %arg11[%c0_14, %c0_15, %c0_16] : memref<2x16x384xf32, #tpu.memory_space<vmem>>, vector<2x16x384xf32>
    %11 = vector.shape_cast %10 : vector<2x16x384xf32> to vector<32x384xf32>
    %12 = arith.truncf %11 : vector<32x384xf32> to vector<32x384xbf16>
    %c0_17 = arith.constant 0 : index
    %c0_18 = arith.constant 0 : index
    %13 = vector.load %arg2[%c0_17, %c0_18] : memref<384x128xbf16, #tpu.memory_space<vmem>>, vector<384x128xbf16>
    %cst_19 = arith.constant dense<0.000000e+00> : vector<32x128xf32>
    %14 = tpu.matmul %12, %13, %cst_19 {dimension_numbers = #tpu.dot_dimension_numbers<[1], [0], [0], [1], [0, 0, 1, 1], [], []>} : vector<32x384xbf16>, vector<384x128xbf16>, vector<32x128xf32> -> vector<32x128xf32>
    %cst_20 = arith.constant dense<0.000000e+00> : vector<128xf32>
    %15 = vector.multi_reduction <add>, %14, %cst_20 [0] : vector<32x128xf32> to vector<128xf32>
    %16 = vector.shape_cast %15 : vector<128xf32> to vector<1x128xf32>
    %17 = arith.mulf %14, %14 : vector<32x128xf32>
    %cst_21 = arith.constant dense<0.000000e+00> : vector<128xf32>
    %18 = vector.multi_reduction <add>, %17, %cst_21 [0] : vector<32x128xf32> to vector<128xf32>
    %19 = vector.shape_cast %18 : vector<128xf32> to vector<1x128xf32>
    %20 = tpu.concatenate %16, %19 in 0 : vector<1x128xf32>, vector<1x128xf32> -> vector<2x128xf32>
    %c0_22 = arith.constant 0 : index
    %c0_23 = arith.constant 0 : index
    %21 = vector.load %arg8[%c0_22, %c0_23] : memref<128x8xf32, #tpu.memory_space<vmem>>, vector<128x8xf32>
    %cst_24 = arith.constant dense<0.000000e+00> : vector<2x8xf32>
    %22 = tpu.matmul %20, %21, %cst_24 {dimension_numbers = #tpu.dot_dimension_numbers<[1], [0], [0], [1], [0, 0, 1, 1], [], []>} : vector<2x128xf32>, vector<128x8xf32>, vector<2x8xf32> -> vector<2x8xf32>
    %23 = vector.extract_strided_slice %22 {offsets = [0, 0], sizes = [1, 8], strides = [1, 1]} : vector<2x8xf32> to vector<1x8xf32>
    %cst_25 = arith.constant 0.001953125 : f32
    %24 = vector.broadcast %cst_25 : f32 to vector<1x8xf32>
    %25 = arith.mulf %23, %24 : vector<1x8xf32>
    %26 = vector.extract_strided_slice %22 {offsets = [1, 0], sizes = [1, 8], strides = [1, 1]} : vector<2x8xf32> to vector<1x8xf32>
    %cst_26 = arith.constant 0.001953125 : f32
    %27 = vector.broadcast %cst_26 : f32 to vector<1x8xf32>
    %28 = arith.mulf %26, %27 : vector<1x8xf32>
    %29 = arith.mulf %25, %25 : vector<1x8xf32>
    %30 = arith.subf %28, %29 : vector<1x8xf32>
    %c0_27 = arith.constant 0 : index
    %c0_28 = arith.constant 0 : index
    %31 = vector.load %arg3[%c0_27, %c0_28] : memref<1x8xf32, #tpu.memory_space<vmem>>, vector<1x8xf32>
    %cst_29 = arith.constant 9.99999974E-6 : f32
    %32 = vector.broadcast %cst_29 : f32 to vector<1x8xf32>
    %33 = arith.addf %30, %32 : vector<1x8xf32>
    %34 = math.rsqrt %33 : vector<1x8xf32>
    %35 = arith.mulf %31, %34 : vector<1x8xf32>
    %c0_30 = arith.constant 0 : index
    %c0_31 = arith.constant 0 : index
    %36 = vector.load %arg4[%c0_30, %c0_31] : memref<1x8xf32, #tpu.memory_space<vmem>>, vector<1x8xf32>
    %37 = arith.mulf %25, %35 : vector<1x8xf32>
    %38 = arith.subf %36, %37 : vector<1x8xf32>
    %39 = tpu.concatenate %35, %38 in 0 : vector<1x8xf32>, vector<1x8xf32> -> vector<2x8xf32>
    %c0_32 = arith.constant 0 : index
    %c0_33 = arith.constant 0 : index
    %40 = vector.load %arg9[%c0_32, %c0_33] : memref<8x128xf32, #tpu.memory_space<vmem>>, vector<8x128xf32>
    %cst_34 = arith.constant dense<0.000000e+00> : vector<2x128xf32>
    %41 = tpu.matmul %39, %40, %cst_34 {dimension_numbers = #tpu.dot_dimension_numbers<[1], [0], [0], [1], [0, 0, 1, 1], [], []>} : vector<2x8xf32>, vector<8x128xf32>, vector<2x128xf32> -> vector<2x128xf32>
    %42 = vector.extract_strided_slice %41 {offsets = [0, 0], sizes = [1, 128], strides = [1, 1]} : vector<2x128xf32> to vector<1x128xf32>
    %43 = vector.broadcast %42 : vector<1x128xf32> to vector<32x128xf32>
    %44 = arith.mulf %14, %43 : vector<32x128xf32>
    %45 = vector.extract_strided_slice %41 {offsets = [1, 0], sizes = [1, 128], strides = [1, 1]} : vector<2x128xf32> to vector<1x128xf32>
    %46 = vector.broadcast %45 : vector<1x128xf32> to vector<32x128xf32>
    %47 = arith.addf %44, %46 : vector<32x128xf32>
    %cst_35 = arith.constant 0.000000e+00 : f32
    %48 = vector.broadcast %cst_35 : f32 to vector<32x128xf32>
    %49 = arith.maximumf %47, %48 : vector<32x128xf32>
    %50 = vector.shape_cast %49 : vector<32x128xf32> to vector<2x16x128xf32>
    %c0_36 = arith.constant 0 : index
    %c0_37 = arith.constant 0 : index
    %c128_38 = arith.constant 128 : index
    %51 = vector.load %arg11[%c0_36, %c0_37, %c128_38] : memref<2x16x384xf32, #tpu.memory_space<vmem>>, vector<2x16x128xf32>
    tpu.vector_store %arg11[%c0_36, %c0_37, %c128_38], %50 {strides = array<i32>} : memref<2x16x384xf32, #tpu.memory_space<vmem>>, vector<2x16x128xf32>,
    %52 = vector.extract_strided_slice %50 {offsets = [0, 0, 0], sizes = [2, 15, 128], strides = [1, 1, 1]} : vector<2x16x128xf32> to vector<2x15x128xf32>
    %c0_39 = arith.constant 0 : index
    %c1_40 = arith.constant 1 : index
    %c0_41 = arith.constant 0 : index
    %53 = vector.load %arg11[%c0_39, %c1_40, %c0_41] : memref<2x16x384xf32, #tpu.memory_space<vmem>>, vector<2x15x128xf32>
    tpu.vector_store %arg11[%c0_39, %c1_40, %c0_41], %52 {strides = array<i32>} : memref<2x16x384xf32, #tpu.memory_space<vmem>>, vector<2x15x128xf32>,
    %54 = vector.extract_strided_slice %50 {offsets = [0, 1, 0], sizes = [2, 15, 128], strides = [1, 1, 1]} : vector<2x16x128xf32> to vector<2x15x128xf32>
    %c0_42 = arith.constant 0 : index
    %c0_43 = arith.constant 0 : index
    %c256_44 = arith.constant 256 : index
    %55 = vector.load %arg11[%c0_42, %c0_43, %c256_44] : memref<2x16x384xf32, #tpu.memory_space<vmem>>, vector<2x15x128xf32>
    tpu.vector_store %arg11[%c0_42, %c0_43, %c256_44], %54 {strides = array<i32>} : memref<2x16x384xf32, #tpu.memory_space<vmem>>, vector<2x15x128xf32>,
    %c0_45 = arith.constant 0 : index
    %c0_46 = arith.constant 0 : index
    %c0_47 = arith.constant 0 : index
    %56 = vector.load %arg11[%c0_45, %c0_46, %c0_47] : memref<2x16x384xf32, #tpu.memory_space<vmem>>, vector<2x16x384xf32>
    %57 = vector.shape_cast %56 : vector<2x16x384xf32> to vector<32x384xf32>
    %58 = arith.truncf %57 : vector<32x384xf32> to vector<32x384xbf16>
    %c0_48 = arith.constant 0 : index
    %c0_49 = arith.constant 0 : index
    %59 = vector.load %arg5[%c0_48, %c0_49] : memref<384x128xbf16, #tpu.memory_space<vmem>>, vector<384x128xbf16>
    %cst_50 = arith.constant dense<0.000000e+00> : vector<32x128xf32>
    %60 = tpu.matmul %58, %59, %cst_50 {dimension_numbers = #tpu.dot_dimension_numbers<[1], [0], [0], [1], [0, 0, 1, 1], [], []>} : vector<32x384xbf16>, vector<384x128xbf16>, vector<32x128xf32> -> vector<32x128xf32>
    %cst_51 = arith.constant dense<0.000000e+00> : vector<128xf32>
    %61 = vector.multi_reduction <add>, %60, %cst_51 [0] : vector<32x128xf32> to vector<128xf32>
    %62 = vector.shape_cast %61 : vector<128xf32> to vector<1x128xf32>
    %63 = arith.mulf %60, %60 : vector<32x128xf32>
    %cst_52 = arith.constant dense<0.000000e+00> : vector<128xf32>
    %64 = vector.multi_reduction <add>, %63, %cst_52 [0] : vector<32x128xf32> to vector<128xf32>
    %65 = vector.shape_cast %64 : vector<128xf32> to vector<1x128xf32>
    %66 = tpu.concatenate %62, %65 in 0 : vector<1x128xf32>, vector<1x128xf32> -> vector<2x128xf32>
    %c0_53 = arith.constant 0 : index
    %c0_54 = arith.constant 0 : index
    %67 = vector.load %arg8[%c0_53, %c0_54] : memref<128x8xf32, #tpu.memory_space<vmem>>, vector<128x8xf32>
    %cst_55 = arith.constant dense<0.000000e+00> : vector<2x8xf32>
    %68 = tpu.matmul %66, %67, %cst_55 {dimension_numbers = #tpu.dot_dimension_numbers<[1], [0], [0], [1], [0, 0, 1, 1], [], []>} : vector<2x128xf32>, vector<128x8xf32>, vector<2x8xf32> -> vector<2x8xf32>
    %69 = vector.extract_strided_slice %68 {offsets = [0, 0], sizes = [1, 8], strides = [1, 1]} : vector<2x8xf32> to vector<1x8xf32>
    %cst_56 = arith.constant 0.001953125 : f32
    %70 = vector.broadcast %cst_56 : f32 to vector<1x8xf32>
    %71 = arith.mulf %69, %70 : vector<1x8xf32>
    %72 = vector.extract_strided_slice %68 {offsets = [1, 0], sizes = [1, 8], strides = [1, 1]} : vector<2x8xf32> to vector<1x8xf32>
    %cst_57 = arith.constant 0.001953125 : f32
    %73 = vector.broadcast %cst_57 : f32 to vector<1x8xf32>
    %74 = arith.mulf %72, %73 : vector<1x8xf32>
    %75 = arith.mulf %71, %71 : vector<1x8xf32>
    %76 = arith.subf %74, %75 : vector<1x8xf32>
    %c0_58 = arith.constant 0 : index
    %c0_59 = arith.constant 0 : index
    %77 = vector.load %arg6[%c0_58, %c0_59] : memref<1x8xf32, #tpu.memory_space<vmem>>, vector<1x8xf32>
    %cst_60 = arith.constant 9.99999974E-6 : f32
    %78 = vector.broadcast %cst_60 : f32 to vector<1x8xf32>
    %79 = arith.addf %76, %78 : vector<1x8xf32>
    %80 = math.rsqrt %79 : vector<1x8xf32>
    %81 = arith.mulf %77, %80 : vector<1x8xf32>
    %c0_61 = arith.constant 0 : index
    %c0_62 = arith.constant 0 : index
    %82 = vector.load %arg7[%c0_61, %c0_62] : memref<1x8xf32, #tpu.memory_space<vmem>>, vector<1x8xf32>
    %83 = arith.mulf %71, %81 : vector<1x8xf32>
    %84 = arith.subf %82, %83 : vector<1x8xf32>
    %85 = tpu.concatenate %81, %84 in 0 : vector<1x8xf32>, vector<1x8xf32> -> vector<2x8xf32>
    %c0_63 = arith.constant 0 : index
    %c0_64 = arith.constant 0 : index
    %86 = vector.load %arg9[%c0_63, %c0_64] : memref<8x128xf32, #tpu.memory_space<vmem>>, vector<8x128xf32>
    %cst_65 = arith.constant dense<0.000000e+00> : vector<2x128xf32>
    %87 = tpu.matmul %85, %86, %cst_65 {dimension_numbers = #tpu.dot_dimension_numbers<[1], [0], [0], [1], [0, 0, 1, 1], [], []>} : vector<2x8xf32>, vector<8x128xf32>, vector<2x128xf32> -> vector<2x128xf32>
    %88 = vector.extract_strided_slice %87 {offsets = [0, 0], sizes = [1, 128], strides = [1, 1]} : vector<2x128xf32> to vector<1x128xf32>
    %89 = vector.broadcast %88 : vector<1x128xf32> to vector<32x128xf32>
    %90 = arith.mulf %60, %89 : vector<32x128xf32>
    %91 = vector.extract_strided_slice %87 {offsets = [1, 0], sizes = [1, 128], strides = [1, 1]} : vector<2x128xf32> to vector<1x128xf32>
    %92 = vector.broadcast %91 : vector<1x128xf32> to vector<32x128xf32>
    %93 = arith.addf %90, %92 : vector<32x128xf32>
    %94 = vector.shape_cast %4 : vector<2x16x128xf32> to vector<32x128xf32>
    %95 = arith.addf %93, %94 : vector<32x128xf32>
    %cst_66 = arith.constant 0.000000e+00 : f32
    %96 = vector.broadcast %cst_66 : f32 to vector<32x128xf32>
    %97 = arith.maximumf %95, %96 : vector<32x128xf32>
    %c0_67 = arith.constant 0 : index
    %c0_68 = arith.constant 0 : index
    %98 = vector.load %arg10[%c0_67, %c0_68] : memref<32x128xf32, #tpu.memory_space<vmem>>, vector<32x128xf32>
    tpu.vector_store %arg10[%c0_67, %c0_68], %97 {strides = array<i32>} : memref<32x128xf32, #tpu.memory_space<vmem>>, vector<32x128xf32>,
    return
  }
  func.func @transform_0(%arg0: i32) -> (i32, i32, i32) {
    %c0_i32 = arith.constant 0 : i32
    %c0_i32_0 = arith.constant 0 : i32
    %c0_i32_1 = arith.constant 0 : i32
    %c0_i32_2 = arith.constant 0 : i32
    return %c0_i32, %c0_i32_0, %c0_i32_1 : i32, i32, i32
  }
  func.func @transform_1(%arg0: i32) -> (i32, i32) {
    %c0_i32 = arith.constant 0 : i32
    %c0_i32_0 = arith.constant 0 : i32
    %c0_i32_1 = arith.constant 0 : i32
    return %c0_i32, %c0_i32_0 : i32, i32
  }
  func.func @transform_2(%arg0: i32) -> (i32, i32) {
    %c0_i32 = arith.constant 0 : i32
    %c0_i32_0 = arith.constant 0 : i32
    %c0_i32_1 = arith.constant 0 : i32
    return %c0_i32, %c0_i32_0 : i32, i32
  }
  func.func @transform_3(%arg0: i32) -> (i32, i32) {
    %c0_i32 = arith.constant 0 : i32
    %c0_i32_0 = arith.constant 0 : i32
    %c0_i32_1 = arith.constant 0 : i32
    return %c0_i32, %c0_i32_0 : i32, i32
  }
  func.func @transform_4(%arg0: i32) -> (i32, i32) {
    %c0_i32 = arith.constant 0 : i32
    %c0_i32_0 = arith.constant 0 : i32
    %c0_i32_1 = arith.constant 0 : i32
    return %c0_i32, %c0_i32_0 : i32, i32
  }
  func.func @transform_5(%arg0: i32) -> (i32, i32) {
    %c0_i32 = arith.constant 0 : i32
    %c0_i32_0 = arith.constant 0 : i32
    %c0_i32_1 = arith.constant 0 : i32
    return %c0_i32, %c0_i32_0 : i32, i32
  }
  func.func @transform_6(%arg0: i32) -> (i32, i32) {
    %c0_i32 = arith.constant 0 : i32
    %c0_i32_0 = arith.constant 0 : i32
    %c0_i32_1 = arith.constant 0 : i32
    return %c0_i32, %c0_i32_0 : i32, i32
  }
  func.func @transform_7(%arg0: i32) -> (i32, i32) {
    %c0_i32 = arith.constant 0 : i32
    %c0_i32_0 = arith.constant 0 : i32
    %c0_i32_1 = arith.constant 0 : i32
    return %c0_i32, %c0_i32_0 : i32, i32
  }
  func.func @transform_8(%arg0: i32) -> (i32, i32) {
    %c0_i32 = arith.constant 0 : i32
    %c0_i32_0 = arith.constant 0 : i32
    %c0_i32_1 = arith.constant 0 : i32
    return %c0_i32, %c0_i32_0 : i32, i32
  }
  func.func @transform_9(%arg0: i32) -> (i32, i32) {
    %c0_i32 = arith.constant 0 : i32
    %c0_i32_0 = arith.constant 0 : i32
    %c0_i32_1 = arith.constant 0 : i32
    return %c0_i32, %c0_i32_0 : i32, i32
  }
}

</mosaic_0001>

<llo_original>
// kernel: basic_block_pallas.1
$region0: #{basic_block_pallas.1}
  #allocation0 [shape = 'u32[]', space=smem, size = 0x4, offset = 0x4, fixed_abs, tag = 'smem constant byte address 0x4 - core index']
  #allocation1 [shape = 'u32[72,128]{1,0:T(1,128)}', space=vmem, size = 0x9000, scoped, tag = 'internal scratch']
  #allocation2 [shape = 'f32[2,16,384]{2,1,0:T(8,128)}', space=vmem, size = 0xc000, scoped, tag = 'scratch operand']
  %s0 = inlined_call_operand.vmem [shape: f32[2,16,128], index: 0, kind: input, shape index: {}]
  %s1 = inlined_call_operand.vmem [shape: bf16[384,128], index: 1, kind: input, shape index: {}]
  %s2 = inlined_call_operand.vmem [shape: f32[1,8], index: 2, kind: input, shape index: {}]
  %s3 = inlined_call_operand.vmem [shape: f32[1,8], index: 3, kind: input, shape index: {}]
  %s4 = inlined_call_operand.vmem [shape: bf16[384,128], index: 4, kind: input, shape index: {}]
  %s5 = inlined_call_operand.vmem [shape: f32[1,8], index: 5, kind: input, shape index: {}]
  %s6 = inlined_call_operand.vmem [shape: f32[1,8], index: 6, kind: input, shape index: {}]
  %s7 = inlined_call_operand.vmem [shape: f32[128,8], index: 7, kind: input, shape index: {}]
  %s8 = inlined_call_operand.vmem [shape: f32[8,128], index: 8, kind: input, shape index: {}]
  %s9 = inlined_call_operand.vmem [shape: f32[32,128], index: 9, kind: output, shape index: {}]
  %s10 = sld [smem:[#allocation0]]
  $region46: #{basic_block_pallas.1} parent=0
    _
  %s12 = ssub.s32 1, %s10
  %s13 = scalar_select 0, %s12, %s10
  // Predicated region
  $region2: #{basic_block_pallas.1} parent=0 // pred_check
    _
  $region3: #{basic_block_pallas.1} parent=0 // pred_check_branch
    %15 = sbr.rel (0) target = $region5
  $region4: #{basic_block_pallas.1} parent=0 // pred_region
    _
  $region5: #{basic_block_pallas.1} parent=0 // pred_fallthru
    _
  // Predicated region
  $region6: #{basic_block_pallas.1} parent=0 // pred_check
    _
  $region7: #{basic_block_pallas.1} parent=0 // pred_check_branch
    %17 = sbr.rel (0) target = $region9
  $region8: #{basic_block_pallas.1} parent=0 // pred_region
    _
  $region9: #{basic_block_pallas.1} parent=0 // pred_fallthru
    _
  // Predicated region
  $region10: #{basic_block_pallas.1} parent=0 // pred_check
    _
  $region11: #{basic_block_pallas.1} parent=0 // pred_check_branch
    %19 = sbr.rel (0) target = $region13
  $region12: #{basic_block_pallas.1} parent=0 // pred_region
    _
  $region13: #{basic_block_pallas.1} parent=0 // pred_fallthru
    _
  // Predicated region
  $region14: #{basic_block_pallas.1} parent=0 // pred_check
    _
  $region15: #{basic_block_pallas.1} parent=0 // pred_check_branch
    %21 = sbr.rel (0) target = $region17
  $region16: #{basic_block_pallas.1} parent=0 // pred_region
    _
  $region17: #{basic_block_pallas.1} parent=0 // pred_fallthru
    _
  // Predicated region
  $region18: #{basic_block_pallas.1} parent=0 // pred_check
    _
  $region19: #{basic_block_pallas.1} parent=0 // pred_check_branch
    %23 = sbr.rel (0) target = $region21
  $region20: #{basic_block_pallas.1} parent=0 // pred_region
    _
  $region21: #{basic_block_pallas.1} parent=0 // pred_fallthru
    _
  // Predicated region
  $region22: #{basic_block_pallas.1} parent=0 // pred_check
    _
  $region23: #{basic_block_pallas.1} parent=0 // pred_check_branch
    %25 = sbr.rel (0) target = $region25
  $region24: #{basic_block_pallas.1} parent=0 // pred_region
    _
  $region25: #{basic_block_pallas.1} parent=0 // pred_fallthru
    _
  // Predicated region
  $region26: #{basic_block_pallas.1} parent=0 // pred_check
    _
  $region27: #{basic_block_pallas.1} parent=0 // pred_check_branch
    %27 = sbr.rel (0) target = $region29
  $region28: #{basic_block_pallas.1} parent=0 // pred_region
    _
  $region29: #{basic_block_pallas.1} parent=0 // pred_fallthru
    _
  // Predicated region
  $region30: #{basic_block_pallas.1} parent=0 // pred_check
    _
  $region31: #{basic_block_pallas.1} parent=0 // pred_check_branch
    %29 = sbr.rel (0) target = $region33
  $region32: #{basic_block_pallas.1} parent=0 // pred_region
    _
  $region33: #{basic_block_pallas.1} parent=0 // pred_fallthru
    _
  // Predicated region
  $region34: #{basic_block_pallas.1} parent=0 // pred_check
    _
  $region35: #{basic_block_pallas.1} parent=0 // pred_check_branch
    %31 = sbr.rel (0) target = $region37
  $region36: #{basic_block_pallas.1} parent=0 // pred_region
    _
  $region37: #{basic_block_pallas.1} parent=0 // pred_fallthru
    _
  %32 = vst [vmem:[#allocation2] sm:$0x1] 0.0
  %33 = vst [vmem:[#allocation2 + $0x30] sm:$0x1] 0.0
  %34 = vst [vmem:[#allocation2 + $0x2f] sm:$0x1] 0.0
  %35 = vst [vmem:[#allocation2 + $0x5f] sm:$0x1] 0.0
  %v36 = vld [vmem:[%s0] sm:$0xff]
  %v37 = vld [vmem:[%s0 + $0x8] sm:$0xff]
  %v38 = vld [vmem:[%s0 + $0x10] sm:$0xff]
  %v39 = vld [vmem:[%s0 + $0x18] sm:$0xff]
  %40 = vst [vmem:[#allocation2 + $0x8] sm:$0xff] %v36
  %41 = vst [vmem:[#allocation2 + $0x20] sm:$0xff] %v37
  %42 = vst [vmem:[#allocation2 + $0x38] sm:$0xff] %v38
  %43 = vst [vmem:[#allocation2 + $0x50] sm:$0xff] %v39
  %vm48 = vcmask 1040384
  %v49 = vrot.slane %v36, 7
  %v50 = vrot.slane %v37, 7
  %v51 = vsel %vm48, %v49, %v50
  %v52 = vrot.slane %v38, 7
  %v53 = vrot.slane %v39, 7
  %v54 = vsel %vm48, %v52, %v53
  %59 = vst [vmem:[#allocation2] sm:$0xfe] %v49
  %60 = vst [vmem:[#allocation2 + $0x18] sm:$0xff] %v51
  %61 = vst [vmem:[#allocation2 + $0x30] sm:$0xfe] %v52
  %62 = vst [vmem:[#allocation2 + $0x48] sm:$0xff] %v54
  %vm63 = vcmask 1046528
  %v64 = vrot.slane %v36, 1
  %v65 = vrot.slane %v37, 1
  %v66 = vsel %vm63, %v64, %v65
  %v67 = vrot.slane %v38, 1
  %v68 = vrot.slane %v39, 1
  %v69 = vsel %vm63, %v67, %v68
  %74 = vst [vmem:[#allocation2 + $0x10] sm:$0xff] %v66
  %75 = vst [vmem:[#allocation2 + $0x28] sm:$0x7f] %v65
  %76 = vst [vmem:[#allocation2 + $0x40] sm:$0xff] %v69
  %77 = vst [vmem:[#allocation2 + $0x58] sm:$0x7f] %v68
  %v78 = vld [vmem:[#allocation2] sm:$0xff]
  %v79 = vld [vmem:[#allocation2 + $0x8] sm:$0xff]
  %v80 = vld [vmem:[#allocation2 + $0x10] sm:$0xff]
  %v81 = vld [vmem:[#allocation2 + $0x18] sm:$0xff]
  %v82 = vld [vmem:[#allocation2 + $0x20] sm:$0xff]
  %v83 = vld [vmem:[#allocation2 + $0x28] sm:$0xff]
  %v84 = vld [vmem:[#allocation2 + $0x30] sm:$0xff]
  %v85 = vld [vmem:[#allocation2 + $0x38] sm:$0xff]
  %v86 = vld [vmem:[#allocation2 + $0x40] sm:$0xff]
  %v87 = vld [vmem:[#allocation2 + $0x48] sm:$0xff]
  %v88 = vld [vmem:[#allocation2 + $0x50] sm:$0xff]
  %v89 = vld [vmem:[#allocation2 + $0x58] sm:$0xff]
  %v90 = vpack.c.bf16 %v81, %v78
  %v91 = vpack.c.bf16 %v82, %v79
  %v92 = vpack.c.bf16 %v83, %v80
  %v93 = vpack.c.bf16 %v87, %v84
  %v94 = vpack.c.bf16 %v88, %v85
  %v95 = vpack.c.bf16 %v89, %v86
  %v96 = vld [vmem:[%s1] sm:$0xf]
  %v97 = vld [vmem:[%s1 + $0x4] sm:$0xf]
  %v98 = vld [vmem:[%s1 + $0x8] sm:$0xf]
  %v99 = vld [vmem:[%s1 + $0xc] sm:$0xf]
  %v100 = vld [vmem:[%s1 + $0x10] sm:$0xf]
  %v101 = vld [vmem:[%s1 + $0x14] sm:$0xf]
  %v102 = vld [vmem:[%s1 + $0x18] sm:$0xf]
  %v103 = vld [vmem:[%s1 + $0x1c] sm:$0xf]
  %v104 = vld [vmem:[%s1 + $0x20] sm:$0xf]
  %v105 = vld [vmem:[%s1 + $0x24] sm:$0xf]
  %v106 = vld [vmem:[%s1 + $0x28] sm:$0xf]
  %v107 = vld [vmem:[%s1 + $0x2c] sm:$0xf]
  %v108 = vld [vmem:[%s1 + $0x30] sm:$0xf]
  %v109 = vld [vmem:[%s1 + $0x34] sm:$0xf]
  %v110 = vld [vmem:[%s1 + $0x38] sm:$0xf]
  %v111 = vld [vmem:[%s1 + $0x3c] sm:$0xf]
  %v112 = vld [vmem:[%s1 + $0x40] sm:$0xf]
  %v113 = vld [vmem:[%s1 + $0x44] sm:$0xf]
  %v114 = vld [vmem:[%s1 + $0x48] sm:$0xf]
  %v115 = vld [vmem:[%s1 + $0x4c] sm:$0xf]
  %v116 = vld [vmem:[%s1 + $0x50] sm:$0xf]
  %v117 = vld [vmem:[%s1 + $0x54] sm:$0xf]
  %v118 = vld [vmem:[%s1 + $0x58] sm:$0xf]
  %v119 = vld [vmem:[%s1 + $0x5c] sm:$0xf]
  %v120 = vld [vmem:[%s1 + $0x60] sm:$0xf]
  %v121 = vld [vmem:[%s1 + $0x64] sm:$0xf]
  %v122 = vld [vmem:[%s1 + $0x68] sm:$0xf]
  %v123 = vld [vmem:[%s1 + $0x6c] sm:$0xf]
  %v124 = vld [vmem:[%s1 + $0x70] sm:$0xf]
  %v125 = vld [vmem:[%s1 + $0x74] sm:$0xf]
  %v126 = vld [vmem:[%s1 + $0x78] sm:$0xf]
  %v127 = vld [vmem:[%s1 + $0x7c] sm:$0xf]
  %v128 = vld [vmem:[%s1 + $0x80] sm:$0xf]
  %v129 = vld [vmem:[%s1 + $0x84] sm:$0xf]
  %v130 = vld [vmem:[%s1 + $0x88] sm:$0xf]
  %v131 = vld [vmem:[%s1 + $0x8c] sm:$0xf]
  %v132 = vld [vmem:[%s1 + $0x90] sm:$0xf]
  %v133 = vld [vmem:[%s1 + $0x94] sm:$0xf]
  %v134 = vld [vmem:[%s1 + $0x98] sm:$0xf]
  %v135 = vld [vmem:[%s1 + $0x9c] sm:$0xf]
  %v136 = vld [vmem:[%s1 + $0xa0] sm:$0xf]
  %v137 = vld [vmem:[%s1 + $0xa4] sm:$0xf]
  %v138 = vld [vmem:[%s1 + $0xa8] sm:$0xf]
  %v139 = vld [vmem:[%s1 + $0xac] sm:$0xf]
  %v140 = vld [vmem:[%s1 + $0xb0] sm:$0xf]
  %v141 = vld [vmem:[%s1 + $0xb4] sm:$0xf]
  %v142 = vld [vmem:[%s1 + $0xb8] sm:$0xf]
  %v143 = vld [vmem:[%s1 + $0xbc] sm:$0xf]
  %v192 = vunpack.c.l.b16 %v96
  %v193 = vunpack.c.l.b16 %v97
  %v194 = vunpack.c.l.b16 %v98
  %v195 = vunpack.c.l.b16 %v99
  %v196 = vunpack.c.l.b16 %v100
  %v197 = vunpack.c.l.b16 %v101
  %v198 = vunpack.c.l.b16 %v102
  %v199 = vunpack.c.l.b16 %v103
  %v200 = vunpack.c.l.b16 %v104
  %v201 = vunpack.c.l.b16 %v105
  %v202 = vunpack.c.l.b16 %v106
  %v203 = vunpack.c.l.b16 %v107
  %v204 = vunpack.c.l.b16 %v108
  %v205 = vunpack.c.l.b16 %v109
  %v206 = vunpack.c.l.b16 %v110
  %v207 = vunpack.c.l.b16 %v111
  %v208 = vunpack.c.l.b16 %v112
  %v209 = vunpack.c.l.b16 %v113
  %v210 = vunpack.c.l.b16 %v114
  %v211 = vunpack.c.l.b16 %v115
  %v212 = vunpack.c.l.b16 %v116
  %v213 = vunpack.c.l.b16 %v117
  %v214 = vunpack.c.l.b16 %v118
  %v215 = vunpack.c.l.b16 %v119
  %v216 = vunpack.c.l.b16 %v120
  %v217 = vunpack.c.l.b16 %v121
  %v218 = vunpack.c.l.b16 %v122
  %v219 = vunpack.c.l.b16 %v123
  %v220 = vunpack.c.l.b16 %v124
  %v221 = vunpack.c.l.b16 %v125
  %v222 = vunpack.c.l.b16 %v126
  %v223 = vunpack.c.l.b16 %v127
  %v224 = vunpack.c.l.b16 %v128
  %v225 = vunpack.c.l.b16 %v129
  %v226 = vunpack.c.l.b16 %v130
  %v227 = vunpack.c.l.b16 %v131
  %v228 = vunpack.c.l.b16 %v132
  %v229 = vunpack.c.l.b16 %v133
  %v230 = vunpack.c.l.b16 %v134
  %v231 = vunpack.c.l.b16 %v135
  %v232 = vunpack.c.l.b16 %v136
  %v233 = vunpack.c.l.b16 %v137
  %v234 = vunpack.c.l.b16 %v138
  %v235 = vunpack.c.l.b16 %v139
  %v236 = vunpack.c.l.b16 %v140
  %v237 = vunpack.c.l.b16 %v141
  %v238 = vunpack.c.l.b16 %v142
  %v239 = vunpack.c.l.b16 %v143
  %v240 = vpack.c.b16 %v193, %v192
  %v241 = vpack.c.b16 %v195, %v194
  %v242 = vpack.c.b16 %v197, %v196
  %v243 = vpack.c.b16 %v199, %v198
  %v244 = vpack.c.b16 %v201, %v200
  %v245 = vpack.c.b16 %v203, %v202
  %v246 = vpack.c.b16 %v205, %v204
  %v247 = vpack.c.b16 %v207, %v206
  %v248 = vpack.c.b16 %v209, %v208
  %v249 = vpack.c.b16 %v211, %v210
  %v250 = vpack.c.b16 %v213, %v212
  %v251 = vpack.c.b16 %v215, %v214
  %v252 = vpack.c.b16 %v217, %v216
  %v253 = vpack.c.b16 %v219, %v218
  %v254 = vpack.c.b16 %v221, %v220
  %v255 = vpack.c.b16 %v223, %v222
  %v256 = vpack.c.b16 %v225, %v224
  %v257 = vpack.c.b16 %v227, %v226
  %v258 = vpack.c.b16 %v229, %v228
  %v259 = vpack.c.b16 %v231, %v230
  %v260 = vpack.c.b16 %v233, %v232
  %v261 = vpack.c.b16 %v235, %v234
  %v262 = vpack.c.b16 %v237, %v236
  %v263 = vpack.c.b16 %v239, %v238
  %288 = vmatpush.bf16.msra.mxu0 %v247
  %289 = vmatpush.bf16.msra.mxu0 %v246
  %290 = vmatpush.bf16.msra.mxu0 %v245
  %291 = vmatpush.bf16.msra.mxu0 %v244
  %292 = vmatpush.bf16.msra.mxu0 %v243
  %293 = vmatpush.bf16.msra.mxu0 %v242
  %294 = vmatpush.bf16.msra.mxu0 %v241
  %295 = vmatpush.bf16.msra.mxu0 %v240
  %296 = vmatmul.bf16.gmra.mxu0 %v90
  %v297 = vpop.f32.mrf.mxu0
  %v298 = vadd.f32 0.0, %v297
  %v299 = vpop.f32.mrf.mxu0
  %v300 = vadd.f32 0.0, %v299
  %301 = vmatmul.bf16.gmra.mxu0 %v93
  %v302 = vpop.f32.mrf.mxu0
  %v303 = vadd.f32 0.0, %v302
  %v304 = vpop.f32.mrf.mxu0
  %v305 = vadd.f32 0.0, %v304
  %306 = vdwg.mxu0
  %307 = vmatpush.bf16.msra.mxu0 %v255
  %308 = vmatpush.bf16.msra.mxu0 %v254
  %309 = vmatpush.bf16.msra.mxu0 %v253
  %310 = vmatpush.bf16.msra.mxu0 %v252
  %311 = vmatpush.bf16.msra.mxu0 %v251
  %312 = vmatpush.bf16.msra.mxu0 %v250
  %313 = vmatpush.bf16.msra.mxu0 %v249
  %314 = vmatpush.bf16.msra.mxu0 %v248
  %315 = vmatmul.bf16.gmra.mxu0 %v91
  %v316 = vpop.f32.mrf.mxu0
  %v317 = vadd.f32 %v298, %v316
  %v318 = vpop.f32.mrf.mxu0
  %v319 = vadd.f32 %v300, %v318
  %320 = vmatmul.bf16.gmra.mxu0 %v94
  %v321 = vpop.f32.mrf.mxu0
  %v322 = vadd.f32 %v303, %v321
  %v323 = vpop.f32.mrf.mxu0
  %v324 = vadd.f32 %v305, %v323
  %325 = vdwg.mxu0
  %326 = vmatpush.bf16.msra.mxu0 %v263
  %327 = vmatpush.bf16.msra.mxu0 %v262
  %328 = vmatpush.bf16.msra.mxu0 %v261
  %329 = vmatpush.bf16.msra.mxu0 %v260
  %330 = vmatpush.bf16.msra.mxu0 %v259
  %331 = vmatpush.bf16.msra.mxu0 %v258
  %332 = vmatpush.bf16.msra.mxu0 %v257
  %333 = vmatpush.bf16.msra.mxu0 %v256
  %334 = vmatmul.bf16.gmra.mxu0 %v92
  %v335 = vpop.f32.mrf.mxu0
  %v336 = vadd.f32 %v317, %v335
  %v337 = vpop.f32.mrf.mxu0
  %v338 = vadd.f32 %v319, %v337
  %339 = vmatmul.bf16.gmra.mxu0 %v95
  %v340 = vpop.f32.mrf.mxu0
  %v341 = vadd.f32 %v322, %v340
  %v342 = vpop.f32.mrf.mxu0
  %v343 = vadd.f32 %v324, %v342
  %344 = vdwg.mxu0
  %v345 = vadd.f32 %v336, %v338
  %v346 = vadd.f32 %v345, %v341
  %v347 = vadd.f32 %v346, %v343
  %v348 = vrot.slane %v347, 4
  %v349 = vadd.f32 %v347, %v348
  %v350 = vrot.slane %v349, 2
  %v351 = vadd.f32 %v349, %v350
  %v352 = vrot.slane %v351, 1
  %v353 = vadd.f32 %v351, %v352
  %v354 = vmul.f32 %v336, %v336
  %v355 = vmul.f32 %v338, %v338
  %v356 = vmul.f32 %v341, %v341
  %v357 = vmul.f32 %v343, %v343
  %v358 = vadd.f32 %v354, %v355
  %v359 = vadd.f32 %v358, %v356
  %v360 = vadd.f32 %v359, %v357
  %v361 = vrot.slane %v360, 4
  %v362 = vadd.f32 %v360, %v361
  %v363 = vrot.slane %v362, 2
  %v364 = vadd.f32 %v362, %v363
  %v365 = vrot.slane %v364, 1
  %v366 = vadd.f32 %v364, %v365
  %v367 = vsel %vm48, %v353, %v366
  %v368 = vld [vmem:[%s7] sm:$0xff]
  %v369 = vld [vmem:[%s7 + $0x8] sm:$0xff]
  %v370 = vld [vmem:[%s7 + $0x10] sm:$0xff]
  %v371 = vld [vmem:[%s7 + $0x18] sm:$0xff]
  %v372 = vld [vmem:[%s7 + $0x20] sm:$0xff]
  %v373 = vld [vmem:[%s7 + $0x28] sm:$0xff]
  %v374 = vld [vmem:[%s7 + $0x30] sm:$0xff]
  %v375 = vld [vmem:[%s7 + $0x38] sm:$0xff]
  %v376 = vld [vmem:[%s7 + $0x40] sm:$0xff]
  %v377 = vld [vmem:[%s7 + $0x48] sm:$0xff]
  %v378 = vld [vmem:[%s7 + $0x50] sm:$0xff]
  %v379 = vld [vmem:[%s7 + $0x58] sm:$0xff]
  %v380 = vld [vmem:[%s7 + $0x60] sm:$0xff]
  %v381 = vld [vmem:[%s7 + $0x68] sm:$0xff]
  %v382 = vld [vmem:[%s7 + $0x70] sm:$0xff]
  %v383 = vld [vmem:[%s7 + $0x78] sm:$0xff]
  %384 = vmatpush.msra.mxu0 %v383
  %385 = vmatpush.msra.mxu0 %v382
  %386 = vmatpush.msra.mxu0 %v381
  %387 = vmatpush.msra.mxu0 %v380
  %388 = vmatpush.msra.mxu0 %v379
  %389 = vmatpush.msra.mxu0 %v378
  %390 = vmatpush.msra.mxu0 %v377
  %391 = vmatpush.msra.mxu0 %v376
  %392 = vmatpush.msra.mxu0 %v375
  %393 = vmatpush.msra.mxu0 %v374
  %394 = vmatpush.msra.mxu0 %v373
  %395 = vmatpush.msra.mxu0 %v372
  %396 = vmatpush.msra.mxu0 %v371
  %397 = vmatpush.msra.mxu0 %v370
  %398 = vmatpush.msra.mxu0 %v369
  %399 = vmatpush.msra.mxu0 %v368
  %400 = vmatmul.f32.gmra.mxu0 %v367
  %v401 = vpop.f32.mrf.mxu0
  %v402 = vadd.f32 0.0, %v401
  %403 = vdwg.mxu0
  %v404 = vmul.f32 %v402, 0.001953125
  %v405 = vmul.f32 %v404, %v404
  %v407 = vrot.slane %v405, 7
  %v409 = vsub.f32 %v404, %v407
  %v410 = vld [vmem:[%s2] sm:$0x1]
  %v411 = vadd.f32 %v409, 1e-05
  %v412 = vrsqrt.pop %v411
  %v413 = vmul.f32 %v412, %v411
  %v414 = vmul.f32 %v413, %v412
  %v415 = vmul.f32 0.5, %v414
  %v416 = vsub.f32 1.5, %v415
  %v417 = vmul.f32 %v412, %v416
  %vm418 = vweird.f32 %v411
  %vm419 = vweird.f32 %v412
  %vm420 = vmor %vm418, %vm419
  %v421 = vsel %vm420, %v412, %v417
  %423 = vst [vmem:[#allocation1] sm:$0xff] %v421
  %s424 = scalar_lea.vmem [#allocation1], 1
  %v425 = vld [vmem:[%s424] ss:$9 sm:$0xff]
  %v427 = vmul.f32 %v410, %v425
  %v428 = vld [vmem:[%s3] sm:$0x1]
  %v429 = vmul.f32 %v404, %v427
  %v430 = vsub.f32 %v428, %v429
  %v432 = vperm.slane %v430, 0
  %v434 = vsel %vm48, %v427, %v432
  %v435 = vld [vmem:[%s8] sm:$0xff]
  %vm436 = vcmask 64512
  %v438 = vsel %vm436, %v434, 0
  %440 = vmatpush.msra.mxu0 0.0
  %441 = vmatpush.msra.mxu0 0.0
  %442 = vmatpush.msra.mxu0 0.0
  %443 = vmatpush.msra.mxu0 0.0
  %444 = vmatpush.msra.mxu0 0.0
  %445 = vmatpush.msra.mxu0 0.0
  %446 = vmatpush.msra.mxu0 0.0
  %447 = vmatpush.msra.mxu0 0.0
  %448 = vmatpush.msra.mxu0 0.0
  %449 = vmatpush.msra.mxu0 0.0
  %450 = vmatpush.msra.mxu0 0.0
  %451 = vmatpush.msra.mxu0 0.0
  %452 = vmatpush.msra.mxu0 0.0
  %453 = vmatpush.msra.mxu0 0.0
  %454 = vmatpush.msra.mxu0 0.0
  %455 = vmatpush.msra.mxu0 %v435
  %456 = vmatmul.f32.gmra.mxu0 %v438
  %v457 = vpop.f32.mrf.mxu0
  %v458 = vadd.f32 0.0, %v457
  %459 = vdwg.mxu0
  %v460 = vperm.slane %v458, 0
  %v461 = vmul.f32 %v336, %v460
  %v462 = vmul.f32 %v338, %v460
  %v463 = vmul.f32 %v341, %v460
  %v464 = vmul.f32 %v343, %v460
  %v465 = vperm.slane %v458, 1
  %v466 = vadd.f32 %v461, %v465
  %v467 = vadd.f32 %v462, %v465
  %v468 = vadd.f32 %v463, %v465
  %v469 = vadd.f32 %v464, %v465
  %v470 = vmax.f32 %v466, 0.0
  %v471 = vmax.f32 %v467, 0.0
  %v472 = vmax.f32 %v468, 0.0
  %v473 = vmax.f32 %v469, 0.0
  %474 = vst [vmem:[#allocation2 + $0x8] sm:$0xff] %v470
  %475 = vst [vmem:[#allocation2 + $0x20] sm:$0xff] %v471
  %476 = vst [vmem:[#allocation2 + $0x38] sm:$0xff] %v472
  %477 = vst [vmem:[#allocation2 + $0x50] sm:$0xff] %v473
  %v482 = vrot.slane %v470, 7
  %v483 = vrot.slane %v471, 7
  %v484 = vsel %vm48, %v482, %v483
  %v485 = vrot.slane %v472, 7
  %v486 = vrot.slane %v473, 7
  %v487 = vsel %vm48, %v485, %v486
  %492 = vst [vmem:[#allocation2] sm:$0xfe] %v482
  %493 = vst [vmem:[#allocation2 + $0x18] sm:$0xff] %v484
  %494 = vst [vmem:[#allocation2 + $0x30] sm:$0xfe] %v485
  %495 = vst [vmem:[#allocation2 + $0x48] sm:$0xff] %v487
  %v496 = vrot.slane %v470, 1
  %v497 = vrot.slane %v471, 1
  %v498 = vsel %vm63, %v496, %v497
  %v499 = vrot.slane %v472, 1
  %v500 = vrot.slane %v473, 1
  %v501 = vsel %vm63, %v499, %v500
  %506 = vst [vmem:[#allocation2 + $0x10] sm:$0xff] %v498
  %507 = vst [vmem:[#allocation2 + $0x28] sm:$0x7f] %v497
  %508 = vst [vmem:[#allocation2 + $0x40] sm:$0xff] %v501
  %509 = vst [vmem:[#allocation2 + $0x58] sm:$0x7f] %v500
  %v510 = vld [vmem:[#allocation2] sm:$0xff]
  %v511 = vld [vmem:[#allocation2 + $0x8] sm:$0xff]
  %v512 = vld [vmem:[#allocation2 + $0x10] sm:$0xff]
  %v513 = vld [vmem:[#allocation2 + $0x18] sm:$0xff]
  %v514 = vld [vmem:[#allocation2 + $0x20] sm:$0xff]
  %v515 = vld [vmem:[#allocation2 + $0x28] sm:$0xff]
  %v516 = vld [vmem:[#allocation2 + $0x30] sm:$0xff]
  %v517 = vld [vmem:[#allocation2 + $0x38] sm:$0xff]
  %v518 = vld [vmem:[#allocation2 + $0x40] sm:$0xff]
  %v519 = vld [vmem:[#allocation2 + $0x48] sm:$0xff]
  %v520 = vld [vmem:[#allocation2 + $0x50] sm:$0xff]
  %v521 = vld [vmem:[#allocation2 + $0x58] sm:$0xff]
  %v522 = vpack.c.bf16 %v513, %v510
  %v523 = vpack.c.bf16 %v514, %v511
  %v524 = vpack.c.bf16 %v515, %v512
  %v525 = vpack.c.bf16 %v519, %v516
  %v526 = vpack.c.bf16 %v520, %v517
  %v527 = vpack.c.bf16 %v521, %v518
  %v528 = vld [vmem:[%s4] sm:$0xf]
  %v529 = vld [vmem:[%s4 + $0x4] sm:$0xf]
  %v530 = vld [vmem:[%s4 + $0x8] sm:$0xf]
  %v531 = vld [vmem:[%s4 + $0xc] sm:$0xf]
  %v532 = vld [vmem:[%s4 + $0x10] sm:$0xf]
  %v533 = vld [vmem:[%s4 + $0x14] sm:$0xf]
  %v534 = vld [vmem:[%s4 + $0x18] sm:$0xf]
  %v535 = vld [vmem:[%s4 + $0x1c] sm:$0xf]
  %v536 = vld [vmem:[%s4 + $0x20] sm:$0xf]
  %v537 = vld [vmem:[%s4 + $0x24] sm:$0xf]
  %v538 = vld [vmem:[%s4 + $0x28] sm:$0xf]
  %v539 = vld [vmem:[%s4 + $0x2c] sm:$0xf]
  %v540 = vld [vmem:[%s4 + $0x30] sm:$0xf]
  %v541 = vld [vmem:[%s4 + $0x34] sm:$0xf]
  %v542 = vld [vmem:[%s4 + $0x38] sm:$0xf]
  %v543 = vld [vmem:[%s4 + $0x3c] sm:$0xf]
  %v544 = vld [vmem:[%s4 + $0x40] sm:$0xf]
  %v545 = vld [vmem:[%s4 + $0x44] sm:$0xf]
  %v546 = vld [vmem:[%s4 + $0x48] sm:$0xf]
  %v547 = vld [vmem:[%s4 + $0x4c] sm:$0xf]
  %v548 = vld [vmem:[%s4 + $0x50] sm:$0xf]
  %v549 = vld [vmem:[%s4 + $0x54] sm:$0xf]
  %v550 = vld [vmem:[%s4 + $0x58] sm:$0xf]
  %v551 = vld [vmem:[%s4 + $0x5c] sm:$0xf]
  %v552 = vld [vmem:[%s4 + $0x60] sm:$0xf]
  %v553 = vld [vmem:[%s4 + $0x64] sm:$0xf]
  %v554 = vld [vmem:[%s4 + $0x68] sm:$0xf]
  %v555 = vld [vmem:[%s4 + $0x6c] sm:$0xf]
  %v556 = vld [vmem:[%s4 + $0x70] sm:$0xf]
  %v557 = vld [vmem:[%s4 + $0x74] sm:$0xf]
  %v558 = vld [vmem:[%s4 + $0x78] sm:$0xf]
  %v559 = vld [vmem:[%s4 + $0x7c] sm:$0xf]
  %v560 = vld [vmem:[%s4 + $0x80] sm:$0xf]
  %v561 = vld [vmem:[%s4 + $0x84] sm:$0xf]
  %v562 = vld [vmem:[%s4 + $0x88] sm:$0xf]
  %v563 = vld [vmem:[%s4 + $0x8c] sm:$0xf]
  %v564 = vld [vmem:[%s4 + $0x90] sm:$0xf]
  %v565 = vld [vmem:[%s4 + $0x94] sm:$0xf]
  %v566 = vld [vmem:[%s4 + $0x98] sm:$0xf]
  %v567 = vld [vmem:[%s4 + $0x9c] sm:$0xf]
  %v568 = vld [vmem:[%s4 + $0xa0] sm:$0xf]
  %v569 = vld [vmem:[%s4 + $0xa4] sm:$0xf]
  %v570 = vld [vmem:[%s4 + $0xa8] sm:$0xf]
  %v571 = vld [vmem:[%s4 + $0xac] sm:$0xf]
  %v572 = vld [vmem:[%s4 + $0xb0] sm:$0xf]
  %v573 = vld [vmem:[%s4 + $0xb4] sm:$0xf]
  %v574 = vld [vmem:[%s4 + $0xb8] sm:$0xf]
  %v575 = vld [vmem:[%s4 + $0xbc] sm:$0xf]
  %v624 = vunpack.c.l.b16 %v528
  %v625 = vunpack.c.l.b16 %v529
  %v626 = vunpack.c.l.b16 %v530
  %v627 = vunpack.c.l.b16 %v531
  %v628 = vunpack.c.l.b16 %v532
  %v629 = vunpack.c.l.b16 %v533
  %v630 = vunpack.c.l.b16 %v534
  %v631 = vunpack.c.l.b16 %v535
  %v632 = vunpack.c.l.b16 %v536
  %v633 = vunpack.c.l.b16 %v537
  %v634 = vunpack.c.l.b16 %v538
  %v635 = vunpack.c.l.b16 %v539
  %v636 = vunpack.c.l.b16 %v540
  %v637 = vunpack.c.l.b16 %v541
  %v638 = vunpack.c.l.b16 %v542
  %v639 = vunpack.c.l.b16 %v543
  %v640 = vunpack.c.l.b16 %v544
  %v641 = vunpack.c.l.b16 %v545
  %v642 = vunpack.c.l.b16 %v546
  %v643 = vunpack.c.l.b16 %v547
  %v644 = vunpack.c.l.b16 %v548
  %v645 = vunpack.c.l.b16 %v549
  %v646 = vunpack.c.l.b16 %v550
  %v647 = vunpack.c.l.b16 %v551
  %v648 = vunpack.c.l.b16 %v552
  %v649 = vunpack.c.l.b16 %v553
  %v650 = vunpack.c.l.b16 %v554
  %v651 = vunpack.c.l.b16 %v555
  %v652 = vunpack.c.l.b16 %v556
  %v653 = vunpack.c.l.b16 %v557
  %v654 = vunpack.c.l.b16 %v558
  %v655 = vunpack.c.l.b16 %v559
  %v656 = vunpack.c.l.b16 %v560
  %v657 = vunpack.c.l.b16 %v561
  %v658 = vunpack.c.l.b16 %v562
  %v659 = vunpack.c.l.b16 %v563
  %v660 = vunpack.c.l.b16 %v564
  %v661 = vunpack.c.l.b16 %v565
  %v662 = vunpack.c.l.b16 %v566
  %v663 = vunpack.c.l.b16 %v567
  %v664 = vunpack.c.l.b16 %v568
  %v665 = vunpack.c.l.b16 %v569
  %v666 = vunpack.c.l.b16 %v570
  %v667 = vunpack.c.l.b16 %v571
  %v668 = vunpack.c.l.b16 %v572
  %v669 = vunpack.c.l.b16 %v573
  %v670 = vunpack.c.l.b16 %v574
  %v671 = vunpack.c.l.b16 %v575
  %v672 = vpack.c.b16 %v625, %v624
  %v673 = vpack.c.b16 %v627, %v626
  %v674 = vpack.c.b16 %v629, %v628
  %v675 = vpack.c.b16 %v631, %v630
  %v676 = vpack.c.b16 %v633, %v632
  %v677 = vpack.c.b16 %v635, %v634
  %v678 = vpack.c.b16 %v637, %v636
  %v679 = vpack.c.b16 %v639, %v638
  %v680 = vpack.c.b16 %v641, %v640
  %v681 = vpack.c.b16 %v643, %v642
  %v682 = vpack.c.b16 %v645, %v644
  %v683 = vpack.c.b16 %v647, %v646
  %v684 = vpack.c.b16 %v649, %v648
  %v685 = vpack.c.b16 %v651, %v650
  %v686 = vpack.c.b16 %v653, %v652
  %v687 = vpack.c.b16 %v655, %v654
  %v688 = vpack.c.b16 %v657, %v656
  %v689 = vpack.c.b16 %v659, %v658
  %v690 = vpack.c.b16 %v661, %v660
  %v691 = vpack.c.b16 %v663, %v662
  %v692 = vpack.c.b16 %v665, %v664
  %v693 = vpack.c.b16 %v667, %v666
  %v694 = vpack.c.b16 %v669, %v668
  %v695 = vpack.c.b16 %v671, %v670
  %720 = vmatpush.bf16.msra.mxu0 %v679
  %721 = vmatpush.bf16.msra.mxu0 %v678
  %722 = vmatpush.bf16.msra.mxu0 %v677
  %723 = vmatpush.bf16.msra.mxu0 %v676
  %724 = vmatpush.bf16.msra.mxu0 %v675
  %725 = vmatpush.bf16.msra.mxu0 %v674
  %726 = vmatpush.bf16.msra.mxu0 %v673
  %727 = vmatpush.bf16.msra.mxu0 %v672
  %728 = vmatmul.bf16.gmra.mxu0 %v522
  %v729 = vpop.f32.mrf.mxu0
  %v730 = vadd.f32 0.0, %v729
  %v731 = vpop.f32.mrf.mxu0
  %v732 = vadd.f32 0.0, %v731
  %733 = vmatmul.bf16.gmra.mxu0 %v525
  %v734 = vpop.f32.mrf.mxu0
  %v735 = vadd.f32 0.0, %v734
  %v736 = vpop.f32.mrf.mxu0
  %v737 = vadd.f32 0.0, %v736
  %738 = vdwg.mxu0
  %739 = vmatpush.bf16.msra.mxu0 %v687
  %740 = vmatpush.bf16.msra.mxu0 %v686
  %741 = vmatpush.bf16.msra.mxu0 %v685
  %742 = vmatpush.bf16.msra.mxu0 %v684
  %743 = vmatpush.bf16.msra.mxu0 %v683
  %744 = vmatpush.bf16.msra.mxu0 %v682
  %745 = vmatpush.bf16.msra.mxu0 %v681
  %746 = vmatpush.bf16.msra.mxu0 %v680
  %747 = vmatmul.bf16.gmra.mxu0 %v523
  %v748 = vpop.f32.mrf.mxu0
  %v749 = vadd.f32 %v730, %v748
  %v750 = vpop.f32.mrf.mxu0
  %v751 = vadd.f32 %v732, %v750
  %752 = vmatmul.bf16.gmra.mxu0 %v526
  %v753 = vpop.f32.mrf.mxu0
  %v754 = vadd.f32 %v735, %v753
  %v755 = vpop.f32.mrf.mxu0
  %v756 = vadd.f32 %v737, %v755
  %757 = vdwg.mxu0
  %758 = vmatpush.bf16.msra.mxu0 %v695
  %759 = vmatpush.bf16.msra.mxu0 %v694
  %760 = vmatpush.bf16.msra.mxu0 %v693
  %761 = vmatpush.bf16.msra.mxu0 %v692
  %762 = vmatpush.bf16.msra.mxu0 %v691
  %763 = vmatpush.bf16.msra.mxu0 %v690
  %764 = vmatpush.bf16.msra.mxu0 %v689
  %765 = vmatpush.bf16.msra.mxu0 %v688
  %766 = vmatmul.bf16.gmra.mxu0 %v524
  %v767 = vpop.f32.mrf.mxu0
  %v768 = vadd.f32 %v749, %v767
  %v769 = vpop.f32.mrf.mxu0
  %v770 = vadd.f32 %v751, %v769
  %771 = vmatmul.bf16.gmra.mxu0 %v527
  %v772 = vpop.f32.mrf.mxu0
  %v773 = vadd.f32 %v754, %v772
  %v774 = vpop.f32.mrf.mxu0
  %v775 = vadd.f32 %v756, %v774
  %776 = vdwg.mxu0
  %v777 = vadd.f32 %v768, %v770
  %v778 = vadd.f32 %v777, %v773
  %v779 = vadd.f32 %v778, %v775
  %v780 = vrot.slane %v779, 4
  %v781 = vadd.f32 %v779, %v780
  %v782 = vrot.slane %v781, 2
  %v783 = vadd.f32 %v781, %v782
  %v784 = vrot.slane %v783, 1
  %v785 = vadd.f32 %v783, %v784
  %v786 = vmul.f32 %v768, %v768
  %v787 = vmul.f32 %v770, %v770
  %v788 = vmul.f32 %v773, %v773
  %v789 = vmul.f32 %v775, %v775
  %v790 = vadd.f32 %v786, %v787
  %v791 = vadd.f32 %v790, %v788
  %v792 = vadd.f32 %v791, %v789
  %v793 = vrot.slane %v792, 4
  %v794 = vadd.f32 %v792, %v793
  %v795 = vrot.slane %v794, 2
  %v796 = vadd.f32 %v794, %v795
  %v797 = vrot.slane %v796, 1
  %v798 = vadd.f32 %v796, %v797
  %v799 = vsel %vm48, %v785, %v798
  %v800 = vld [vmem:[%s7] sm:$0xff]
  %v801 = vld [vmem:[%s7 + $0x8] sm:$0xff]
  %v802 = vld [vmem:[%s7 + $0x10] sm:$0xff]
  %v803 = vld [vmem:[%s7 + $0x18] sm:$0xff]
  %v804 = vld [vmem:[%s7 + $0x20] sm:$0xff]
  %v805 = vld [vmem:[%s7 + $0x28] sm:$0xff]
  %v806 = vld [vmem:[%s7 + $0x30] sm:$0xff]
  %v807 = vld [vmem:[%s7 + $0x38] sm:$0xff]
  %v808 = vld [vmem:[%s7 + $0x40] sm:$0xff]
  %v809 = vld [vmem:[%s7 + $0x48] sm:$0xff]
  %v810 = vld [vmem:[%s7 + $0x50] sm:$0xff]
  %v811 = vld [vmem:[%s7 + $0x58] sm:$0xff]
  %v812 = vld [vmem:[%s7 + $0x60] sm:$0xff]
  %v813 = vld [vmem:[%s7 + $0x68] sm:$0xff]
  %v814 = vld [vmem:[%s7 + $0x70] sm:$0xff]
  %v815 = vld [vmem:[%s7 + $0x78] sm:$0xff]
  %816 = vmatpush.msra.mxu0 %v815
  %817 = vmatpush.msra.mxu0 %v814
  %818 = vmatpush.msra.mxu0 %v813
  %819 = vmatpush.msra.mxu0 %v812
  %820 = vmatpush.msra.mxu0 %v811
  %821 = vmatpush.msra.mxu0 %v810
  %822 = vmatpush.msra.mxu0 %v809
  %823 = vmatpush.msra.mxu0 %v808
  %824 = vmatpush.msra.mxu0 %v807
  %825 = vmatpush.msra.mxu0 %v806
  %826 = vmatpush.msra.mxu0 %v805
  %827 = vmatpush.msra.mxu0 %v804
  %828 = vmatpush.msra.mxu0 %v803
  %829 = vmatpush.msra.mxu0 %v802
  %830 = vmatpush.msra.mxu0 %v801
  %831 = vmatpush.msra.mxu0 %v800
  %832 = vmatmul.f32.gmra.mxu0 %v799
  %v833 = vpop.f32.mrf.mxu0
  %v834 = vadd.f32 0.0, %v833
  %835 = vdwg.mxu0
  %v836 = vmul.f32 %v834, 0.001953125
  %v837 = vmul.f32 %v836, %v836
  %v839 = vrot.slane %v837, 7
  %v841 = vsub.f32 %v836, %v839
  %v842 = vld [vmem:[%s5] sm:$0x1]
  %v843 = vadd.f32 %v841, 1e-05
  %v844 = vrsqrt.pop %v843
  %v845 = vmul.f32 %v844, %v843
  %v846 = vmul.f32 %v845, %v844
  %v847 = vmul.f32 0.5, %v846
  %v848 = vsub.f32 1.5, %v847
  %v849 = vmul.f32 %v844, %v848
  %vm850 = vweird.f32 %v843
  %vm851 = vweird.f32 %v844
  %vm852 = vmor %vm850, %vm851
  %v853 = vsel %vm852, %v844, %v849
  %855 = vst [vmem:[#allocation1] sm:$0xff] %v853
  %s856 = scalar_lea.vmem [#allocation1], 1
  %v857 = vld [vmem:[%s856] ss:$9 sm:$0xff]
  %v859 = vmul.f32 %v842, %v857
  %v860 = vld [vmem:[%s6] sm:$0x1]
  %v861 = vmul.f32 %v836, %v859
  %v862 = vsub.f32 %v860, %v861
  %v864 = vperm.slane %v862, 0
  %v866 = vsel %vm48, %v859, %v864
  %v867 = vld [vmem:[%s8] sm:$0xff]
  %v869 = vsel %vm436, %v866, 0
  %871 = vmatpush.msra.mxu0 0.0
  %872 = vmatpush.msra.mxu0 0.0
  %873 = vmatpush.msra.mxu0 0.0
  %874 = vmatpush.msra.mxu0 0.0
  %875 = vmatpush.msra.mxu0 0.0
  %876 = vmatpush.msra.mxu0 0.0
  %877 = vmatpush.msra.mxu0 0.0
  %878 = vmatpush.msra.mxu0 0.0
  %879 = vmatpush.msra.mxu0 0.0
  %880 = vmatpush.msra.mxu0 0.0
  %881 = vmatpush.msra.mxu0 0.0
  %882 = vmatpush.msra.mxu0 0.0
  %883 = vmatpush.msra.mxu0 0.0
  %884 = vmatpush.msra.mxu0 0.0
  %885 = vmatpush.msra.mxu0 0.0
  %886 = vmatpush.msra.mxu0 %v867
  %887 = vmatmul.f32.gmra.mxu0 %v869
  %v888 = vpop.f32.mrf.mxu0
  %v889 = vadd.f32 0.0, %v888
  %890 = vdwg.mxu0
  %v891 = vperm.slane %v889, 0
  %v892 = vmul.f32 %v768, %v891
  %v893 = vmul.f32 %v770, %v891
  %v894 = vmul.f32 %v773, %v891
  %v895 = vmul.f32 %v775, %v891
  %v896 = vperm.slane %v889, 1
  %v897 = vadd.f32 %v892, %v896
  %v898 = vadd.f32 %v893, %v896
  %v899 = vadd.f32 %v894, %v896
  %v900 = vadd.f32 %v895, %v896
  %v901 = vadd.f32 %v897, %v36
  %v902 = vadd.f32 %v898, %v37
  %v903 = vadd.f32 %v899, %v38
  %v904 = vadd.f32 %v900, %v39
  %v905 = vmax.f32 %v901, 0.0
  %v906 = vmax.f32 %v902, 0.0
  %v907 = vmax.f32 %v903, 0.0
  %v908 = vmax.f32 %v904, 0.0
  %909 = vst [vmem:[%s9] sm:$0xff] %v905
  %910 = vst [vmem:[%s9 + $0x8] sm:$0xff] %v906
  %911 = vst [vmem:[%s9 + $0x10] sm:$0xff] %v907
  %912 = vst [vmem:[%s9 + $0x18] sm:$0xff] %v908
  // Predicated region
  $region38: #{basic_block_pallas.1} parent=0 // pred_check
    _
  $region39: #{basic_block_pallas.1} parent=0 // pred_check_branch
    %914 = sbr.rel (0) target = $region41
  $region40: #{basic_block_pallas.1} parent=0 // pred_region
    _
  $region41: #{basic_block_pallas.1} parent=0 // pred_fallthru
    _
  // Predicated region
  $region42: #{basic_block_pallas.1} parent=0 // pred_check
    _
  $region43: #{basic_block_pallas.1} parent=0 // pred_check_branch
    %916 = sbr.rel (0) target = $region45
  $region44: #{basic_block_pallas.1} parent=0 // pred_region
    _
  $region45: #{basic_block_pallas.1} parent=0 // pred_fallthru
    _

</llo_original>
